<compile_context>
chip_gen: v6e
topology: v6e:2x2x1
jax: 0.10.0
libtpu: 0.0.40
codegen_flags: <defaults>
</compile_context>

<pallas_src>
import functools

import jax
import jax.numpy as jnp
from jax.experimental import pallas as pl
from jax.experimental.pallas import tpu as pltpu


def round_up(x, m):
    return (x + m - 1) // m * m


def _vmem_budget():
    """(physical VMEM bytes, usable budget) for the current TPU generation."""
    cap = 64 * 1024 * 1024                      # conservative fallback (v7x)
    try:
        cap = int(pltpu.get_tpu_info().vmem_capacity_bytes)
    except Exception:
        pass
    return cap, (cap * 4) // 5                  # ~51 MiB on v7x, ~102 MiB on v5e/v6e


# ---------------------------------------------------------------------------
# A-resident kernel: grid = (n_layers,)
#   A lives single-buffered in VMEM scratch (one manual DMA at layer 0).
#   The output block (constant index map) is the activation carrier H across layers.
# ---------------------------------------------------------------------------
def gcn_resident_kernel(x_hbm, a_hbm, w_ref, g_ref, b_ref, o_ref, a_vmem, sem,
                        *, eps, n_real):
    l = pl.program_id(0)

    @pl.when(l == 0)
    def _():
        cp_a = pltpu.make_async_copy(a_hbm, a_vmem, sem.at[0])   # A -> VMEM, once
        cp_x = pltpu.make_async_copy(x_hbm, o_ref, sem.at[1])    # x -> activation carrier
        cp_a.start()
        cp_x.start()
        cp_a.wait()
        cp_x.wait()

    w = w_ref[0]                                                 # (F_pad, F_pad)
    hw = jnp.dot(o_ref[...].astype(w.dtype), w, preferred_element_type=jnp.float32)
    z = jnp.dot(a_vmem[...], hw.astype(a_vmem.dtype), preferred_element_type=jnp.float32)

    # BatchNorm over the true node rows. Padded rows of z are exactly zero (padded A rows
    # are zero), so plain column sums divided by n_real are exact -- no row mask needed.
    inv_n = 1.0 / n_real
    mean = jnp.sum(z, axis=0, keepdims=True) * inv_n
    ex2 = jnp.sum(z * z, axis=0, keepdims=True) * inv_n
    var = jnp.maximum(ex2 - mean * mean, 0.0)
    scale = jax.lax.rsqrt(var + eps) * g_ref[0]
    shift = b_ref[0] - mean * scale
    o_ref[...] = jnp.maximum(z * scale + shift, 0.0)             # next layer's H / final out


# ---------------------------------------------------------------------------
# Streaming kernel: grid = (n_layers, n_row_tiles); A streamed as (tn, N_pad) row tiles.
#   BN column sums / sum-of-squares accumulate per tile; z rows are stashed in the
#   VMEM-resident output block and normalized in place on the last row tile.
# ---------------------------------------------------------------------------
def gcn_stream_kernel(x_hbm, a_ref, w_ref, g_ref, b_ref, o_ref,
                      hw_sc, sum_sc, sumsq_sc, sem,
                      *, eps, n_real, tn, n_row_tiles):
    l = pl.program_id(0)
    r = pl.program_id(1)

    @pl.when(jnp.logical_and(l == 0, r == 0))
    def _():
        cp = pltpu.make_async_copy(x_hbm, o_ref, sem.at[0])      # x -> activation carrier
        cp.start()
        cp.wait()

    # Once per layer: HW = H @ W_l (reads the previous activation from o_ref), reset stats.
    @pl.when(r == 0)
    def _():
        w = w_ref[0]
        hw_sc[...] = jnp.dot(o_ref[...].astype(w.dtype), w,
                             preferred_element_type=jnp.float32).astype(hw_sc.dtype)
        sum_sc[...] = jnp.zeros_like(sum_sc)
        sumsq_sc[...] = jnp.zeros_like(sumsq_sc)

    # Every row tile: z rows = A_rows @ HW, accumulate BN stats, stash z rows in o_ref.
    z_tile = jnp.dot(a_ref[...], hw_sc[...], preferred_element_type=jnp.float32)
    sum_sc[...] += jnp.sum(z_tile, axis=0, keepdims=True)
    sumsq_sc[...] += jnp.sum(z_tile * z_tile, axis=0, keepdims=True)
    row0 = pl.multiple_of(r * tn, tn)
    o_ref[pl.ds(row0, tn), :] = z_tile

    # Last row tile: finalize mean/var, single normalize+ReLU pass over the layer.
    @pl.when(r == n_row_tiles - 1)
    def _():
        inv_n = 1.0 / n_real
        mean = sum_sc[...] * inv_n
        var = jnp.maximum(sumsq_sc[...] * inv_n - mean * mean, 0.0)
        scale = jax.lax.rsqrt(var + eps) * g_ref[0]
        shift = b_ref[0] - mean * scale
        o_ref[...] = jnp.maximum(o_ref[...] * scale + shift, 0.0)


# ---------------------------------------------------------------------------
# Wrapper: pad/pack, generation-aware residency / tile / vmem-limit decisions,
# one pallas_call for all layers.
# ---------------------------------------------------------------------------
def gcn_forward(a_norm, node_features, params, *, eps=1e-5,
                compute_dtype=jnp.float32, _force_stream_tn=None):
    n = a_norm.shape[0]
    n_layers = len(params)
    dims = [node_features.shape[1]] + [w.shape[1] for (w, _, _) in params]
    f_pad = round_up(max(dims), 128)                 # lane-dense feature padding
    itemsize = jnp.dtype(compute_dtype).itemsize

    cap, usable = _vmem_budget()
    n_pad = round_up(n, 128)
    out_bytes = n_pad * f_pad * 4                    # f32 activation / output block
    w_bytes = 2 * f_pad * f_pad * itemsize           # W_l, double-buffered across layers
    misc = 2 * 1024 * 1024

    # Resident need: A single-buffered (manual DMA) + out block (x2 safety) + matmul/BN temps.
    need_resident = (n_pad * n_pad * itemsize + 2 * out_bytes + 3 * out_bytes
                     + w_bytes + misc)

    def stream_need(tn_):
        np_ = round_up(n, tn_)
        return (2 * tn_ * np_ * itemsize             # A row tile, double-buffered
                + 2 * np_ * f_pad * 4                # out block
                + np_ * f_pad * itemsize             # HW scratch
                + 3 * tn_ * f_pad * 4                # z-tile temporaries
                + w_bytes + misc)

    a_resident = (_force_stream_tn is None) and (need_resident <= usable)

    if a_resident:
        tn = n_pad
        n_row_tiles = 1
        vmem_need = need_resident
    else:
        if _force_stream_tn is not None:
            tn = int(_force_stream_tn)
        else:
            tn = 128                                 # streaming path is HBM-bound on A:
            for cand in (512, 256):                  # prefer the biggest tile that fits
                if cand <= round_up(n, 128) and stream_need(cand) <= usable:
                    tn = cand
                    break
        n_pad = round_up(n, tn)
        n_row_tiles = n_pad // tn
        vmem_need = stream_need(tn)

    vmem_limit = int(min(max(vmem_need * 5 // 4, 32 * 1024 * 1024), cap))

    # ---- pad & pack (glue; in a real model do this once, not per call) ----
    a_p = jnp.zeros((n_pad, n_pad), compute_dtype).at[:n, :n].set(
        a_norm.astype(compute_dtype))
    x_p = jnp.zeros((n_pad, f_pad), jnp.float32).at[:n, :dims[0]].set(
        node_features.astype(jnp.float32))
    w_all = jnp.zeros((n_layers, f_pad, f_pad), compute_dtype)
    g_all = jnp.ones((n_layers, 1, f_pad), jnp.float32)
    b_all = jnp.zeros((n_layers, 1, f_pad), jnp.float32)
    for li, (w, gamma, beta) in enumerate(params):
        fin, fout = w.shape
        w_all = w_all.at[li, :fin, :fout].set(w.astype(compute_dtype))
        g_all = g_all.at[li, 0, :fout].set(gamma)
        b_all = b_all.at[li, 0, :fout].set(beta)

    if a_resident:
        kernel = functools.partial(gcn_resident_kernel, eps=eps, n_real=float(n))
        grid_spec = pltpu.PrefetchScalarGridSpec(
            num_scalar_prefetch=0,
            grid=(n_layers,),
            in_specs=[
                pl.BlockSpec(memory_space=pl.ANY),                      # x (HBM, DMA once)
                pl.BlockSpec(memory_space=pl.ANY),                      # A (HBM, DMA once)
                pl.BlockSpec((1, f_pad, f_pad), lambda l: (l, 0, 0)),   # W_l
                pl.BlockSpec((1, 1, f_pad), lambda l: (l, 0, 0)),       # gamma_l
                pl.BlockSpec((1, 1, f_pad), lambda l: (l, 0, 0)),       # beta_l
            ],
            out_specs=pl.BlockSpec((n_pad, f_pad), lambda l: (0, 0)),   # activation carrier
            scratch_shapes=[
                pltpu.VMEM((n_pad, n_pad), compute_dtype),              # A, single-buffered
                pltpu.SemaphoreType.DMA((2,)),
            ],
        )
        dim_sem = ("arbitrary",)
    else:
        kernel = functools.partial(gcn_stream_kernel, eps=eps, n_real=float(n),
                                   tn=tn, n_row_tiles=n_row_tiles)
        grid_spec = pltpu.PrefetchScalarGridSpec(
            num_scalar_prefetch=0,
            grid=(n_layers, n_row_tiles),
            in_specs=[
                pl.BlockSpec(memory_space=pl.ANY),                          # x (DMA once)
                pl.BlockSpec((tn, n_pad), lambda l, r: (r, 0)),             # A row tile
                pl.BlockSpec((1, f_pad, f_pad), lambda l, r: (l, 0, 0)),    # W_l
                pl.BlockSpec((1, 1, f_pad), lambda l, r: (l, 0, 0)),        # gamma_l
                pl.BlockSpec((1, 1, f_pad), lambda l, r: (l, 0, 0)),        # beta_l
            ],
            out_specs=pl.BlockSpec((n_pad, f_pad), lambda l, r: (0, 0)),
            scratch_shapes=[
                pltpu.VMEM((n_pad, f_pad), compute_dtype),                  # HW = H @ W_l
                pltpu.VMEM((1, f_pad), jnp.float32),                        # BN col sum
                pltpu.VMEM((1, f_pad), jnp.float32),                        # BN col sum sq
                pltpu.SemaphoreType.DMA((2,)),
            ],
        )
        dim_sem = ("arbitrary", "arbitrary")

    out_padded = pl.pallas_call(
        kernel,
        out_shape=jax.ShapeDtypeStruct((n_pad, f_pad), jnp.float32),
        grid_spec=grid_spec,
        compiler_params=pltpu.CompilerParams(
            dimension_semantics=dim_sem,
            vmem_limit_bytes=vmem_limit),
    )(x_p, a_p, w_all, g_all, b_all)

    return out_padded[:n, :dims[-1]]


# ---------------------------------------------------------------------------
# Glue: graph -> dense symmetric-normalized adjacency (DGL GraphConv norm='both')
# ---------------------------------------------------------------------------
def normalized_adjacency(adj):
    deg = jnp.sum(adj, axis=1)
    inv_sqrt = jnp.where(deg > 0, 1.0 / jnp.sqrt(jnp.maximum(deg, 1.0)), 0.0)
    return adj * inv_sqrt[:, None] * inv_sqrt[None, :]


def make_graph(key, n_nodes):
    """Deterministic random undirected graph (ring + random extras): every node deg >= 1."""
    rand = jax.random.uniform(key, (n_nodes, n_nodes))
    adj = (rand < 0.1).astype(jnp.float32)
    adj = jnp.maximum(adj, adj.T)                    # symmetric
    ring = jnp.eye(n_nodes, k=1) + jnp.eye(n_nodes, k=-1)
    ring = ring.at[0, n_nodes - 1].set(1.0).at[n_nodes - 1, 0].set(1.0)
    adj = jnp.maximum(adj, ring)
    adj = adj * (1.0 - jnp.eye(n_nodes))             # no self loops (DGL default)
    return normalized_adjacency(adj)


def init_params(key, in_features, hidden_sizes, out_features):
    """Params per layer: (W, gamma, beta). GraphConv bias (init 0) is omitted: the following
    BatchNorm mean subtraction cancels any per-feature constant exactly."""
    dims = [in_features] + list(hidden_sizes) + [out_features]
    params = []
    for li in range(len(dims) - 1):
        fin, fout = dims[li], dims[li + 1]
        key, kw = jax.random.split(key)
        scale = jnp.sqrt(6.0 / (fin + fout))         # Xavier-uniform (GraphConv default)
        w = jax.random.uniform(kw, (fin, fout), jnp.float32, -scale, scale)
        gamma = jnp.ones((fout,), jnp.float32)       # BatchNorm1d weight init = 1
        beta = jnp.zeros((fout,), jnp.float32)       # BatchNorm1d bias init = 0
        params.append((w, gamma, beta))
    return params


def reference_forward(a_norm, node_features, params, eps=1e-5,
                      compute_dtype=jnp.float32):
    a = a_norm.astype(compute_dtype)
    h = node_features
    for (w, gamma, beta) in params:
        hw = jnp.dot(h.astype(compute_dtype), w.astype(compute_dtype),
                     preferred_element_type=jnp.float32)
        z = jnp.dot(a, hw.astype(compute_dtype), preferred_element_type=jnp.float32)
        mean = jnp.mean(z, axis=0, keepdims=True)
        var = jnp.mean((z - mean) ** 2, axis=0, keepdims=True)
        zn = (z - mean) * jax.lax.rsqrt(var + eps) * gamma + beta
        h = jnp.maximum(zn, 0.0)
    return h


if __name__ == "__main__":
    key = jax.random.PRNGKey(0)

    # ---- 1) A-resident fused path, f32 ----
    n_nodes, in_features, hidden_sizes, out_features = 64, 16, [32, 32], 8
    key, k_adj, k_feat, k_par = jax.random.split(key, 4)
    a_norm = make_graph(k_adj, n_nodes)
    node_features = jax.random.normal(k_feat, (n_nodes, in_features), jnp.float32)
    params = init_params(k_par, in_features, hidden_sizes, out_features)

    out = jax.block_until_ready(gcn_forward(a_norm, node_features, params))
    ref = reference_forward(a_norm, node_features, params)
    assert out.shape == (n_nodes, out_features)
    assert jnp.allclose(out, ref, atol=5e-4, rtol=5e-4), \
        float(jnp.max(jnp.abs(out - ref)))

    # ---- 2) bf16 adjacency / weight path (f32 MXU accumulation, f32 BatchNorm) ----
    out_bf = jax.block_until_ready(
        gcn_forward(a_norm, node_features, params, compute_dtype=jnp.bfloat16))
    ref_bf = reference_forward(a_norm, node_features, params,
                               compute_dtype=jnp.bfloat16)
    assert jnp.allclose(out_bf, ref_bf, atol=1e-2, rtol=1e-2), \
        float(jnp.max(jnp.abs(out_bf - ref_bf)))

    # ---- 3) streaming path (forced): multi row tile, incremental BN stats ----
    n2, f2_in, f2_hidden, f2_out = 200, 24, [48], 16
    key, k_adj2, k_feat2, k_par2 = jax.random.split(key, 4)
    a_norm2 = make_graph(k_adj2, n2)
    x2 = jax.random.normal(k_feat2, (n2, f2_in), jnp.float32)
    params2 = init_params(k_par2, f2_in, f2_hidden, f2_out)

    out2 = jax.block_until_ready(
        gcn_forward(a_norm2, x2, params2, _force_stream_tn=128))
    ref2 = reference_forward(a_norm2, x2, params2)
    assert out2.shape == (n2, f2_out)
    assert jnp.allclose(out2, ref2, atol=1e-3, rtol=1e-3), \
        float(jnp.max(jnp.abs(out2 - ref2)))

    print("KERNEL_OK")
</pallas_src>

<mosaic_0001>
module attributes {stable_mosaic.version = 11 : i64} {
  func.func @gcn_resident_kernel(%arg0: i32, %arg1: memref<128x128xf32, #tpu.memory_space<any>>, %arg2: memref<128x128xf32, #tpu.memory_space<any>>, %arg3: memref<1x128x128xf32, #tpu.memory_space<vmem>>, %arg4: memref<1x1x128xf32, #tpu.memory_space<vmem>>, %arg5: memref<1x1x128xf32, #tpu.memory_space<vmem>>, %arg6: memref<128x128xf32, #tpu.memory_space<vmem>>, %arg7: memref<128x128xf32, #tpu.memory_space<vmem>>, %arg8: memref<2x!tpu.dma_semaphore, #tpu.memory_space<semaphore_mem>>) attributes {dimension_semantics = [#tpu.dimension_semantics<arbitrary>], iteration_bounds = array<i64: 3>, scalar_prefetch = 0 : i64, scratch_operands = 2 : i64, tpu.core_type = #tpu.core_type<tc>, window_params = [{}, {}, {transform_indices = @transform_2, window_bounds = array<i64: 1, 128, 128>}, {transform_indices = @transform_3, window_bounds = array<i64: 1, 1, 128>}, {transform_indices = @transform_4, window_bounds = array<i64: 1, 1, 128>}, {pipeline_mode = #tpu.pipeline_mode<synchronous>, transform_indices = @transform_5, window_bounds = array<i64: 128, 128>}]} {
    %c0_i32 = arith.constant 0 : i32
    %0 = arith.cmpi eq, %arg0, %c0_i32 : i32
    %1 = arith.extui %0 : i1 to i32
    %c0_i32_0 = arith.constant 0 : i32
    %2 = arith.cmpi ne, %1, %c0_i32_0 : i32
    scf.if %2 {
      %c0_i32_23 = arith.constant 0 : i32
      %39 = tpu.memref_slice %arg8[%c0_i32_23] : memref<2x!tpu.dma_semaphore, #tpu.memory_space<semaphore_mem>> -> memref<1x!tpu.dma_semaphore, #tpu.memory_space<semaphore_mem>>
      %40 = tpu.memref_squeeze %39 : memref<1x!tpu.dma_semaphore, #tpu.memory_space<semaphore_mem>> -> memref<!tpu.dma_semaphore, #tpu.memory_space<semaphore_mem>>
      tpu.enqueue_dma source(%arg2 : memref<128x128xf32, #tpu.memory_space<any>>) target(%arg7 : memref<128x128xf32, #tpu.memory_space<vmem>>) target_semaphore(%40 : memref<!tpu.dma_semaphore, #tpu.memory_space<semaphore_mem>>)
      %c1_i32 = arith.constant 1 : i32
      %41 = tpu.memref_slice %arg8[%c1_i32] : memref<2x!tpu.dma_semaphore, #tpu.memory_space<semaphore_mem>> -> memref<1x!tpu.dma_semaphore, #tpu.memory_space<semaphore_mem>>
      %42 = tpu.memref_squeeze %41 : memref<1x!tpu.dma_semaphore, #tpu.memory_space<semaphore_mem>> -> memref<!tpu.dma_semaphore, #tpu.memory_space<semaphore_mem>>
      tpu.enqueue_dma source(%arg1 : memref<128x128xf32, #tpu.memory_space<any>>) target(%arg6 : memref<128x128xf32, #tpu.memory_space<vmem>>) target_semaphore(%42 : memref<!tpu.dma_semaphore, #tpu.memory_space<semaphore_mem>>)
      %c0_i32_24 = arith.constant 0 : i32
      %43 = tpu.memref_slice %arg8[%c0_i32_24] : memref<2x!tpu.dma_semaphore, #tpu.memory_space<semaphore_mem>> -> memref<1x!tpu.dma_semaphore, #tpu.memory_space<semaphore_mem>>
      %44 = tpu.memref_squeeze %43 : memref<1x!tpu.dma_semaphore, #tpu.memory_space<semaphore_mem>> -> memref<!tpu.dma_semaphore, #tpu.memory_space<semaphore_mem>>
      tpu.wait_dma2 semaphore(%44 : memref<!tpu.dma_semaphore, #tpu.memory_space<semaphore_mem>>) src(%arg2 : memref<128x128xf32, #tpu.memory_space<any>>) dst(%arg7 : memref<128x128xf32, #tpu.memory_space<vmem>>)
      %c1_i32_25 = arith.constant 1 : i32
      %45 = tpu.memref_slice %arg8[%c1_i32_25] : memref<2x!tpu.dma_semaphore, #tpu.memory_space<semaphore_mem>> -> memref<1x!tpu.dma_semaphore, #tpu.memory_space<semaphore_mem>>
      %46 = tpu.memref_squeeze %45 : memref<1x!tpu.dma_semaphore, #tpu.memory_space<semaphore_mem>> -> memref<!tpu.dma_semaphore, #tpu.memory_space<semaphore_mem>>
      tpu.wait_dma2 semaphore(%46 : memref<!tpu.dma_semaphore, #tpu.memory_space<semaphore_mem>>) src(%arg1 : memref<128x128xf32, #tpu.memory_space<any>>) dst(%arg6 : memref<128x128xf32, #tpu.memory_space<vmem>>)
    } else {
    }
    %c0 = arith.constant 0 : index
    %c0_1 = arith.constant 0 : index
    %c0_2 = arith.constant 0 : index
    %3 = vector.load %arg3[%c0, %c0_1, %c0_2] : memref<1x128x128xf32, #tpu.memory_space<vmem>>, vector<1x128x128xf32>
    %4 = vector.shape_cast %3 : vector<1x128x128xf32> to vector<128x128xf32>
    %c0_3 = arith.constant 0 : index
    %c0_4 = arith.constant 0 : index
    %5 = vector.load %arg6[%c0_3, %c0_4] : memref<128x128xf32, #tpu.memory_space<vmem>>, vector<128x128xf32>
    %cst = arith.constant dense<0.000000e+00> : vector<128x128xf32>
    %6 = tpu.matmul %5, %4, %cst {dimension_numbers = #tpu.dot_dimension_numbers<[1], [0], [0], [1], [0, 0, 1, 1], [], []>} : vector<128x128xf32>, vector<128x128xf32>, vector<128x128xf32> -> vector<128x128xf32>
    %c0_5 = arith.constant 0 : index
    %c0_6 = arith.constant 0 : index
    %7 = vector.load %arg7[%c0_5, %c0_6] : memref<128x128xf32, #tpu.memory_space<vmem>>, vector<128x128xf32>
    %cst_7 = arith.constant dense<0.000000e+00> : vector<128x128xf32>
    %8 = tpu.matmul %7, %6, %cst_7 {dimension_numbers = #tpu.dot_dimension_numbers<[1], [0], [0], [1], [0, 0, 1, 1], [], []>} : vector<128x128xf32>, vector<128x128xf32>, vector<128x128xf32> -> vector<128x128xf32>
    %cst_8 = arith.constant dense<0.000000e+00> : vector<128xf32>
    %9 = vector.multi_reduction <add>, %8, %cst_8 [0] : vector<128x128xf32> to vector<128xf32>
    %10 = vector.shape_cast %9 : vector<128xf32> to vector<1x128xf32>
    %cst_9 = arith.constant 1.562500e-02 : f32
    %11 = vector.broadcast %cst_9 : f32 to vector<1x128xf32>
    %12 = arith.mulf %10, %11 : vector<1x128xf32>
    %13 = arith.mulf %8, %8 : vector<128x128xf32>
    %cst_10 = arith.constant dense<0.000000e+00> : vector<128xf32>
    %14 = vector.multi_reduction <add>, %13, %cst_10 [0] : vector<128x128xf32> to vector<128xf32>
    %15 = vector.shape_cast %14 : vector<128xf32> to vector<1x128xf32>
    %cst_11 = arith.constant 1.562500e-02 : f32
    %16 = vector.broadcast %cst_11 : f32 to vector<1x128xf32>
    %17 = arith.mulf %15, %16 : vector<1x128xf32>
    %18 = arith.mulf %12, %12 : vector<1x128xf32>
    %19 = arith.subf %17, %18 : vector<1x128xf32>
    %cst_12 = arith.constant 0.000000e+00 : f32
    %20 = vector.broadcast %cst_12 : f32 to vector<1x128xf32>
    %21 = arith.maximumf %19, %20 : vector<1x128xf32>
    %cst_13 = arith.constant 9.99999974E-6 : f32
    %22 = vector.broadcast %cst_13 : f32 to vector<1x128xf32>
    %23 = arith.addf %21, %22 : vector<1x128xf32>
    %24 = math.rsqrt %23 : vector<1x128xf32>
    %c0_14 = arith.constant 0 : index
    %c0_15 = arith.constant 0 : index
    %c0_16 = arith.constant 0 : index
    %25 = vector.load %arg4[%c0_14, %c0_15, %c0_16] : memref<1x1x128xf32, #tpu.memory_space<vmem>>, vector<1x1x128xf32>
    %26 = vector.shape_cast %25 : vector<1x1x128xf32> to vector<1x128xf32>
    %27 = arith.mulf %24, %26 : vector<1x128xf32>
    %c0_17 = arith.constant 0 : index
    %c0_18 = arith.constant 0 : index
    %c0_19 = arith.constant 0 : index
    %28 = vector.load %arg5[%c0_17, %c0_18, %c0_19] : memref<1x1x128xf32, #tpu.memory_space<vmem>>, vector<1x1x128xf32>
    %29 = vector.shape_cast %28 : vector<1x1x128xf32> to vector<1x128xf32>
    %30 = arith.mulf %12, %27 : vector<1x128xf32>
    %31 = arith.subf %29, %30 : vector<1x128xf32>
    %32 = vector.broadcast %27 : vector<1x128xf32> to vector<128x128xf32>
    %33 = arith.mulf %8, %32 : vector<128x128xf32>
    %34 = vector.broadcast %31 : vector<1x128xf32> to vector<128x128xf32>
    %35 = arith.addf %33, %34 : vector<128x128xf32>
    %cst_20 = arith.constant 0.000000e+00 : f32
    %36 = vector.broadcast %cst_20 : f32 to vector<128x128xf32>
    %37 = arith.maximumf %35, %36 : vector<128x128xf32>
    %c0_21 = arith.constant 0 : index
    %c0_22 = arith.constant 0 : index
    %38 = vector.load %arg6[%c0_21, %c0_22] : memref<128x128xf32, #tpu.memory_space<vmem>>, vector<128x128xf32>
    tpu.vector_store %arg6[%c0_21, %c0_22], %37 {strides = array<i32>} : memref<128x128xf32, #tpu.memory_space<vmem>>, vector<128x128xf32>,
    return
  }
  func.func @transform_2(%arg0: i32) -> (i32, i32, i32) {
    %c0_i32 = arith.constant 0 : i32
    %c0_i32_0 = arith.constant 0 : i32
    %c0_i32_1 = arith.constant 0 : i32
    return %arg0, %c0_i32, %c0_i32_0 : i32, i32, i32
  }
  func.func @transform_3(%arg0: i32) -> (i32, i32, i32) {
    %c0_i32 = arith.constant 0 : i32
    %c0_i32_0 = arith.constant 0 : i32
    %c0_i32_1 = arith.constant 0 : i32
    return %arg0, %c0_i32, %c0_i32_0 : i32, i32, i32
  }
  func.func @transform_4(%arg0: i32) -> (i32, i32, i32) {
    %c0_i32 = arith.constant 0 : i32
    %c0_i32_0 = arith.constant 0 : i32
    %c0_i32_1 = arith.constant 0 : i32
    return %arg0, %c0_i32, %c0_i32_0 : i32, i32, i32
  }
  func.func @transform_5(%arg0: i32) -> (i32, i32) {
    %c0_i32 = arith.constant 0 : i32
    %c0_i32_0 = arith.constant 0 : i32
    %c0_i32_1 = arith.constant 0 : i32
    return %c0_i32, %c0_i32_0 : i32, i32
  }
}

</mosaic_0001>

<llo_original>
// kernel: tpu_custom_call.1
$region0: #{tpu_custom_call.1}
  #allocation0 [shape = 'u32[]', space=smem, size = 0x4, offset = 0x4, fixed_abs, tag = 'smem constant byte address 0x4 - core index']
  #allocation1 [shape = 'u32[144,128]{1,0:T(1,128)}', space=vmem, size = 0x12000, scoped, tag = 'internal scratch']
  #allocation2 [shape = 'f32[128,128]{1,0:T(8,128)}', space=vmem, size = 0x10000, scoped, tag = 'scratch operand']
  #allocation3 [shape = 's32[2]{0}', space=sflag, size = 0x8, scoped, tag = 'scratch operand']
  #allocation8 [shape = 's32[]', space=sflag, size = 0x4, offset = 0, fixed_abs, tag = 'sflag constant byte address 0x0 - dummy sync flag']
  #allocation9 [shape = 's32[]', space=sflag, size = 0x4, offset = 0, fixed_abs, tag = 'sflag constant byte address 0x0 - dummy sync flag']
  #allocation10 [shape = 'u32[]', space=smem, size = 0x4, offset = 0x44, fixed_abs, tag = 'smem constant byte address 0x44 - assertion arg 0']
  #allocation11 [shape = 'u32[]', space=smem, size = 0x4, offset = 0x48, fixed_abs, tag = 'smem constant byte address 0x48 - assertion arg 1']
  #allocation12 [shape = 's32[]', space=sflag, size = 0x4, offset = 0, fixed_abs, tag = 'sflag constant byte address 0x0 - dummy sync flag']
  #allocation13 [shape = 's32[]', space=sflag, size = 0x4, offset = 0, fixed_abs, tag = 'sflag constant byte address 0x0 - dummy sync flag']
  %s0 = inlined_call_operand.hbm [shape: f32[128,128], index: 0, kind: input, shape index: {}]
  %s1 = inlined_call_operand.hbm [shape: f32[128,128], index: 1, kind: input, shape index: {}]
  %s2 = inlined_call_operand.hbm [shape: f32[3,128,128], index: 2, kind: input, shape index: {}]
  %s3 = inlined_call_operand.vmem [shape: f32[3,1,128], index: 3, kind: input, shape index: {}]
  %s4 = inlined_call_operand.vmem [shape: f32[3,1,128], index: 4, kind: input, shape index: {}]
  %s5 = inlined_call_operand.hbm [shape: f32[128,128], index: 5, kind: output, shape index: {}]
  %s6 = sld [smem:[#allocation0]]
  $region61: #{tpu_custom_call.1} parent=0
    _
  %s8 = ssub.s32 1, %s6
  %s9 = scalar_select 0, %s8, %s6
  $region1: #{tpu_custom_call.1} parent=0
    #allocation4 [shape = 'u8[131072]{0}', space=vmem, size = 0x20000, scoped, tag = 'input window, operand 2']
    #allocation5 [shape = 's32[2]{0}', space=sflag, size = 0x8, scoped, tag = 'scoped memory for tpu_custom_call.1']
    #allocation6 [shape = 's32[2]{0}', space=sflag, size = 0x8, scoped, tag = 'scoped memory for tpu_custom_call.1']
    #allocation7 [shape = 'u8[65536]{0}', space=vmem, size = 0x10000, scoped, tag = 'output window, operand 0, single buffered']
    %10 = vsyncpa [#allocation5], 0
    %s11 = scalar_lea.sflag [#allocation5], 1
    %12 = vsyncpa %s11, 0
    %13 = vsyncpa [#allocation6], 0
    loop: start=0, step=1, limit=5
    $region2: #{tpu_custom_call.1} parent=1 // loop_pre_header
      _
    $region3: #{tpu_custom_call.1} parent=1 // loop_header
      %s15 = sphi 0, %s19
      %p16 = scmp.ge.s32.totalorder %s15, 5
      %s25 = sphi 0, %s27
      %s28 = sphi 0, %s25
      %s29 = sphi 0, %s28
      %s45 = sphi 0, %s29
      %s51 = sphi 0, %s53
      %s54 = sphi 0, %s51
      %s55 = sphi 0, %s54
      %s71 = sphi 0, %s55
      %s77 = sphi 0, %s79
      %s80 = sphi 0, %s77
      %s81 = sphi 0, %s80
      %s97 = sphi 0, %s81
      %s101 = sphi 0, %s101
      %s103 = sphi 0, %s101
      %s104 = sphi 0, %s103
      %s118 = sphi 0, %s104
    $region4: #{tpu_custom_call.1} parent=1 // loop_header_branch
      %18 = sbr.rel (%p16) target = $region8
    $region5: #{tpu_custom_call.1} parent=1 // loop_body
      %s20 = ssub.s32 %s15, 1
      %s21 = ssub.s32 %s15, 2
      %s22 = sadd.s32 %s15, 1
      %s23 = ssub.s32 %s15, %s22
      %p24 = scmp.eq.s32.totalorder %s23, 0
      %s26 = sadd.s32 %s25, 1
      %s27 = scalar_select %p24, %s25, %s26
      %p30 = pneg %p24
      %p31 = scmp.eq.s32.totalorder %s15, 2
      %p32 = por %p30, %p31
      %p33 = scmp.ne.s32.totalorder %s25, %s28
      %p34 = scmp.eq.s32.totalorder %s15, 0
      %p35 = por %p33, %p34
      %p36 = scmp.ne.s32.totalorder %s25, %s28
      %p37 = scmp.eq.s32.totalorder %s20, 2
      %p38 = por %p36, %p37
      %p39 = scmp.ne.s32.totalorder %s28, %s29
      %p40 = scmp.eq.s32.totalorder %s20, 0
      %p41 = por %p39, %p40
      %p42 = scmp.ne.s32.totalorder %s28, %s29
      %p43 = scmp.eq.s32.totalorder %s21, 2
      %p44 = por %p42, %p43
      %p46 = scmp.ne.s32.totalorder %s29, %s45
      %p47 = scmp.eq.s32.totalorder %s21, 0
      %p48 = por %p46, %p47
      %s49 = ssub.s32 %s15, %s22
      %p50 = scmp.eq.s32.totalorder %s49, 0
      %s52 = sadd.s32 %s51, 1
      %s53 = scalar_select %p50, %s51, %s52
      %p56 = pneg %p50
      %p57 = scmp.eq.s32.totalorder %s15, 2
      %p58 = por %p56, %p57
      %p59 = scmp.ne.s32.totalorder %s51, %s54
      %p60 = scmp.eq.s32.totalorder %s15, 0
      %p61 = por %p59, %p60
      %p62 = scmp.ne.s32.totalorder %s51, %s54
      %p63 = scmp.eq.s32.totalorder %s20, 2
      %p64 = por %p62, %p63
      %p65 = scmp.ne.s32.totalorder %s54, %s55
      %p66 = scmp.eq.s32.totalorder %s20, 0
      %p67 = por %p65, %p66
      %p68 = scmp.ne.s32.totalorder %s54, %s55
      %p69 = scmp.eq.s32.totalorder %s21, 2
      %p70 = por %p68, %p69
      %p72 = scmp.ne.s32.totalorder %s55, %s71
      %p73 = scmp.eq.s32.totalorder %s21, 0
      %p74 = por %p72, %p73
      %s75 = ssub.s32 %s15, %s22
      %p76 = scmp.eq.s32.totalorder %s75, 0
      %s78 = sadd.s32 %s77, 1
      %s79 = scalar_select %p76, %s77, %s78
      %p82 = pneg %p76
      %p83 = scmp.eq.s32.totalorder %s15, 2
      %p84 = por %p82, %p83
      %p85 = scmp.ne.s32.totalorder %s77, %s80
      %p86 = scmp.eq.s32.totalorder %s15, 0
      %p87 = por %p85, %p86
      %p88 = scmp.ne.s32.totalorder %s77, %s80
      %p89 = scmp.eq.s32.totalorder %s20, 2
      %p90 = por %p88, %p89
      %p91 = scmp.ne.s32.totalorder %s80, %s81
      %p92 = scmp.eq.s32.totalorder %s20, 0
      %p93 = por %p91, %p92
      %p94 = scmp.ne.s32.totalorder %s80, %s81
      %p95 = scmp.eq.s32.totalorder %s21, 2
      %p96 = por %p94, %p95
      %p98 = scmp.ne.s32.totalorder %s81, %s97
      %p99 = scmp.eq.s32.totalorder %s21, 0
      %p100 = por %p98, %p99
      %s102 = sadd.s32 %s101, 1
      %p105 = scmp.eq.s32.totalorder %s15, 2
      %p106 = scmp.ne.s32.totalorder %s101, %s103
      %p107 = scmp.eq.s32.totalorder %s15, 0
      %p108 = por %p106, %p107
      %p109 = scmp.ne.s32.totalorder %s101, %s103
      %p110 = scmp.eq.s32.totalorder %s20, 2
      %p111 = por %p109, %p110
      %p112 = scmp.ne.s32.totalorder %s103, %s104
      %p113 = scmp.eq.s32.totalorder %s20, 0
      %p114 = por %p112, %p113
      %p115 = scmp.ne.s32.totalorder %s103, %s104
      %p116 = scmp.eq.s32.totalorder %s21, 2
      %p117 = por %p115, %p116
      %p119 = scmp.ne.s32.totalorder %s104, %s118
      %p120 = scmp.eq.s32.totalorder %s21, 0
      %p121 = por %p119, %p120
      %p122 = scmp.le.s32.totalorder 1, %s15
      %p123 = scmp.lt.s32.totalorder %s15, 4
      %p124 = pnand %p122, %p123
      %p125 = pneg %p124
      // Predicated region
      $region9: #{tpu_custom_call.1} parent=5 // pred_check
        _
      $region10: #{tpu_custom_call.1} parent=5 // pred_check_branch
        %127 = sbr.rel (%p124) target = $region12
      $region11: #{tpu_custom_call.1} parent=5 // pred_region
        %s128 = ssub.s32 %s15, 1
      $region12: #{tpu_custom_call.1} parent=5 // pred_fallthru
        _
      %p129 = scmp.lt.s32.totalorder %s15, 3
      // Predicated region
      $region13: #{tpu_custom_call.1} parent=5 // pred_check
        %p130 = pneg %p129
      $region14: #{tpu_custom_call.1} parent=5 // pred_check_branch
        %132 = sbr.rel (%p130) target = $region16
      $region15: #{tpu_custom_call.1} parent=5 // pred_region
        // Predicated region
        $region17: #{tpu_custom_call.1} parent=15 // pred_check
          %p133 = pneg %p35
        $region18: #{tpu_custom_call.1} parent=15 // pred_check_branch
          %135 = sbr.rel (%p133) target = $region20
        $region19: #{tpu_custom_call.1} parent=15 // pred_region
          %s136 = sand.u32 %s25, 1
          %s137 = scalar_lea.sflag [#allocation5], %s136
          %s138 = sand.u32 %s25, 1
          %s139 = smul.addr %s138, 128
          %s140 = scalar_lea.vmem [#allocation4], %s139
          %s142 = ssub.s32 2048, 2048
          %143 = vsyncadd %s137, %s142
          %s144 = smul.addr %s15, 16
          %s145 = smul.addr %s144, 128
          %s146 = scalar_lea.hbm %s2, %s145
          %s147 = sshll.u32 %s140, 4
          %s148 = int_to_ptr.vmem [resolvable:$true] %s147
          %153 = dma.hbm_to_vmem [thread:$0]  %s146, 2048, %s148, %s137, 128, 128, 8
        $region20: #{tpu_custom_call.1} parent=15 // pred_fallthru
          _
        // Predicated region
        $region21: #{tpu_custom_call.1} parent=15 // pred_check
          %p154 = pneg %p61
        $region22: #{tpu_custom_call.1} parent=15 // pred_check_branch
          %156 = sbr.rel (%p154) target = $region24
        $region23: #{tpu_custom_call.1} parent=15 // pred_region
          %p157 = scmp.lt.s32.totalorder %s15, 2
          %s158 = scalar_select %p157, %s15, 2
          %s159 = scalar_lea.vmem %s3, %s158
        $region24: #{tpu_custom_call.1} parent=15 // pred_fallthru
          _
        // Predicated region
        $region25: #{tpu_custom_call.1} parent=15 // pred_check
          %p160 = pneg %p87
        $region26: #{tpu_custom_call.1} parent=15 // pred_check_branch
          %162 = sbr.rel (%p160) target = $region28
        $region27: #{tpu_custom_call.1} parent=15 // pred_region
          %p163 = scmp.lt.s32.totalorder %s15, 2
          %s164 = scalar_select %p163, %s15, 2
          %s165 = scalar_lea.vmem %s4, %s164
        $region28: #{tpu_custom_call.1} parent=15 // pred_fallthru
          _
      $region16: #{tpu_custom_call.1} parent=5 // pred_fallthru
        _
      %p166 = scmp.le.s32.totalorder 1, %s15
      %p167 = scmp.lt.s32.totalorder %s15, 4
      %p168 = pnand %p166, %p167
      %p169 = pneg %p168
      // Predicated region
      $region29: #{tpu_custom_call.1} parent=5 // pred_check
        _
      $region30: #{tpu_custom_call.1} parent=5 // pred_check_branch
        %171 = sbr.rel (%p168) target = $region32
      $region31: #{tpu_custom_call.1} parent=5 // pred_region
        %s172 = ssub.s32 %s15, 1
        %s173 = sand.u32 %s28, 1
        %s174 = scalar_lea.sflag [#allocation5], %s173
        %s175 = sand.u32 %s28, 1
        %s176 = smul.addr %s175, 128
        %s177 = scalar_lea.vmem [#allocation4], %s176
        // Predicated region
        $region33: #{tpu_custom_call.1} parent=31 // pred_check
          %p178 = pneg %p41
        $region34: #{tpu_custom_call.1} parent=31 // pred_check_branch
          %180 = sbr.rel (%p178) target = $region36
        $region35: #{tpu_custom_call.1} parent=31 // pred_region
          %181 = dma.done %s174, 2048
        $region36: #{tpu_custom_call.1} parent=31 // pred_fallthru
          _
        %s182 = sand.u32 %s28, 1
        %s183 = scalar_lea.sflag [#allocation5], %s182
        %s184 = sand.u32 %s28, 1
        %s185 = smul.addr %s184, 128
        %s186 = scalar_lea.vmem [#allocation4], %s185
        %p187 = pneg %p41
        %p188 = pneg %p38
        %p189 = scmp.lt.s32.totalorder %s20, 2
        %s190 = scalar_select %p189, %s20, 2
        %s191 = scalar_lea.vmem %s3, %s190
        %p192 = pneg %p67
        %p193 = pneg %p64
        %p194 = scmp.lt.s32.totalorder %s20, 2
        %s195 = scalar_select %p194, %s20, 2
        %s196 = scalar_lea.vmem %s4, %s195
        %p197 = pneg %p93
        %p198 = pneg %p90
        %p199 = pneg %p114
        %p200 = pneg %p111
        %p201 = scmp.lt.s32.totalorder %s20, 2
        %s202 = scalar_select %p201, %s20, 2
        %s203 = scalar_lea.vmem %s3, %s202
        %p204 = scmp.lt.s32.totalorder %s20, 2
        %s205 = scalar_select %p204, %s20, 2
        %s206 = scalar_lea.vmem %s4, %s205
        %p207 = scmp.eq.s32.totalorder %s20, 0
        // Predicated region
        $region37: #{tpu_custom_call.1} parent=31 // pred_check
          %p208 = pneg %p207
        $region38: #{tpu_custom_call.1} parent=31 // pred_check_branch
          %210 = sbr.rel (%p208) target = $region40
        $region39: #{tpu_custom_call.1} parent=31 // pred_region
          // Predicated region
          $region41: #{tpu_custom_call.1} parent=39 // pred_check
            _
          $region42: #{tpu_custom_call.1} parent=39 // pred_check_branch
            %212 = sbr.rel target = $region44
          $region43: #{tpu_custom_call.1} parent=39 // pred_region
            %213 = sst [smem:[#allocation10]] [#allocation9]
            %214 = sst [smem:[#allocation11]] [#allocation8]
          $region44: #{tpu_custom_call.1} parent=39 // pred_fallthru
            _
          %216 = shalt.err (0)
          %s218 = sshll.u32 [#allocation2], 4
          %s219 = int_to_ptr.vmem [resolvable:$true] %s218
          %221 = dma.hbm_to_vmem [thread:$0]  %s1, 2048, %s219, [#allocation3]
          %s222 = scalar_lea.sflag [#allocation3], 1
          // Predicated region
          $region45: #{tpu_custom_call.1} parent=39 // pred_check
            _
          $region46: #{tpu_custom_call.1} parent=39 // pred_check_branch
            %224 = sbr.rel target = $region48
          $region47: #{tpu_custom_call.1} parent=39 // pred_region
            %225 = sst [smem:[#allocation10]] [#allocation13]
            %226 = sst [smem:[#allocation11]] [#allocation12]
          $region48: #{tpu_custom_call.1} parent=39 // pred_fallthru
            _
          %228 = shalt.err (0)
          %s230 = sshll.u32 [#allocation7], 4
          %s231 = int_to_ptr.vmem [resolvable:$true] %s230
          %233 = dma.hbm_to_vmem [thread:$0]  %s0, 2048, %s231, %s222
          %s234 = smul.u32 128, 1
          %s235 = sshll.u32 %s234, 4
          %236 = dma.done [#allocation3], %s235
          %s237 = sshll.u32 %s234, 4
          %238 = dma.done %s222, %s237
        $region40: #{tpu_custom_call.1} parent=31 // pred_fallthru
          _
        %v239 = vld [vmem:[%s177] sm:$0xff]
        %v240 = vld [vmem:[%s177 + $0x8] sm:$0xff]
        %v241 = vld [vmem:[%s177 + $0x10] sm:$0xff]
        %v242 = vld [vmem:[%s177 + $0x18] sm:$0xff]
        %v243 = vld [vmem:[%s177 + $0x20] sm:$0xff]
        %v244 = vld [vmem:[%s177 + $0x28] sm:$0xff]
        %v245 = vld [vmem:[%s177 + $0x30] sm:$0xff]
        %v246 = vld [vmem:[%s177 + $0x38] sm:$0xff]
        %v247 = vld [vmem:[%s177 + $0x40] sm:$0xff]
        %v248 = vld [vmem:[%s177 + $0x48] sm:$0xff]
        %v249 = vld [vmem:[%s177 + $0x50] sm:$0xff]
        %v250 = vld [vmem:[%s177 + $0x58] sm:$0xff]
        %v251 = vld [vmem:[%s177 + $0x60] sm:$0xff]
        %v252 = vld [vmem:[%s177 + $0x68] sm:$0xff]
        %v253 = vld [vmem:[%s177 + $0x70] sm:$0xff]
        %v254 = vld [vmem:[%s177 + $0x78] sm:$0xff]
        %v255 = vld [vmem:[#allocation7] sm:$0xff]
        %v256 = vld [vmem:[#allocation7 + $0x8] sm:$0xff]
        %v257 = vld [vmem:[#allocation7 + $0x10] sm:$0xff]
        %v258 = vld [vmem:[#allocation7 + $0x18] sm:$0xff]
        %v259 = vld [vmem:[#allocation7 + $0x20] sm:$0xff]
        %v260 = vld [vmem:[#allocation7 + $0x28] sm:$0xff]
        %v261 = vld [vmem:[#allocation7 + $0x30] sm:$0xff]
        %v262 = vld [vmem:[#allocation7 + $0x38] sm:$0xff]
        %v263 = vld [vmem:[#allocation7 + $0x40] sm:$0xff]
        %v264 = vld [vmem:[#allocation7 + $0x48] sm:$0xff]
        %v265 = vld [vmem:[#allocation7 + $0x50] sm:$0xff]
        %v266 = vld [vmem:[#allocation7 + $0x58] sm:$0xff]
        %v267 = vld [vmem:[#allocation7 + $0x60] sm:$0xff]
        %v268 = vld [vmem:[#allocation7 + $0x68] sm:$0xff]
        %v269 = vld [vmem:[#allocation7 + $0x70] sm:$0xff]
        %v270 = vld [vmem:[#allocation7 + $0x78] sm:$0xff]
        %271 = vmatprep.subr.mxu0 0.0
        %272 = vmatpush1.msra.mxu0 %v254
        %273 = vmatprep.subr.mxu0 0.0
        %274 = vmatpush1.msra.mxu0 %v253
        %275 = vmatprep.subr.mxu0 0.0
        %276 = vmatpush1.msra.mxu0 %v252
        %277 = vmatprep.subr.mxu0 0.0
        %278 = vmatpush1.msra.mxu0 %v251
        %279 = vmatprep.subr.mxu0 0.0
        %280 = vmatpush1.msra.mxu0 %v250
        %281 = vmatprep.subr.mxu0 0.0
        %282 = vmatpush1.msra.mxu0 %v249
        %283 = vmatprep.subr.mxu0 0.0
        %284 = vmatpush1.msra.mxu0 %v248
        %285 = vmatprep.subr.mxu0 0.0
        %286 = vmatpush1.msra.mxu0 %v247
        %287 = vmatprep.subr.mxu0 0.0
        %288 = vmatpush1.msra.mxu0 %v246
        %289 = vmatprep.subr.mxu0 0.0
        %290 = vmatpush1.msra.mxu0 %v245
        %291 = vmatprep.subr.mxu0 0.0
        %292 = vmatpush1.msra.mxu0 %v244
        %293 = vmatprep.subr.mxu0 0.0
        %294 = vmatpush1.msra.mxu0 %v243
        %295 = vmatprep.subr.mxu0 0.0
        %296 = vmatpush1.msra.mxu0 %v242
        %297 = vmatprep.subr.mxu0 0.0
        %298 = vmatpush1.msra.mxu0 %v241
        %299 = vmatprep.subr.mxu0 0.0
        %300 = vmatpush1.msra.mxu0 %v240
        %301 = vmatprep.subr.mxu0 0.0
        %302 = vmatpush1.msra.mxu0 %v239
        %303 = vmatprep.subr.mxu0 0.0
        %304 = vmatpush2.msra.mxu0 0.0
        %305 = vmatprep.subr.mxu0 0.0
        %306 = vmatpush2.msra.mxu0 0.0
        %307 = vmatprep.subr.mxu0 0.0
        %308 = vmatpush2.msra.mxu0 0.0
        %309 = vmatprep.subr.mxu0 0.0
        %310 = vmatpush2.msra.mxu0 0.0
        %311 = vmatprep.subr.mxu0 0.0
        %312 = vmatpush2.msra.mxu0 0.0
        %313 = vmatprep.subr.mxu0 0.0
        %314 = vmatpush2.msra.mxu0 0.0
        %315 = vmatprep.subr.mxu0 0.0
        %316 = vmatpush2.msra.mxu0 0.0
        %317 = vmatprep.subr.mxu0 0.0
        %318 = vmatpush2.msra.mxu0 0.0
        %319 = vmatprep.subr.mxu0 0.0
        %320 = vmatpush2.msra.mxu0 0.0
        %321 = vmatprep.subr.mxu0 0.0
        %322 = vmatpush2.msra.mxu0 0.0
        %323 = vmatprep.subr.mxu0 0.0
        %324 = vmatpush2.msra.mxu0 0.0
        %325 = vmatprep.subr.mxu0 0.0
        %326 = vmatpush2.msra.mxu0 0.0
        %327 = vmatprep.subr.mxu0 0.0
        %328 = vmatpush2.msra.mxu0 0.0
        %329 = vmatprep.subr.mxu0 0.0
        %330 = vmatpush2.msra.mxu0 0.0
        %331 = vmatprep.subr.mxu0 0.0
        %332 = vmatpush2.msra.mxu0 0.0
        %333 = vmatprep.subr.mxu0 0.0
        %334 = vmatpush2.msra.mxu0 0.0
        %335 = vmatprep.mubr.f32.mxu0 0.0
        %336 = vmatmul.mubr.f32.gmra.mxu0 %v255
        %v337 = vpop.f32.mrf.mxu0
        %v338 = vadd.f32 0.0, %v337
        %v339 = vpop.f32.mrf.mxu0
        %340 = vmatprep.mubr.f32.mxu0 0.0
        %341 = vmatmul.mubr.f32.gmra.mxu0 %v256
        %v342 = vpop.f32.mrf.mxu0
        %v343 = vadd.f32 0.0, %v342
        %v344 = vpop.f32.mrf.mxu0
        %345 = vmatprep.mubr.f32.mxu0 0.0
        %346 = vmatmul.mubr.f32.gmra.mxu0 %v257
        %v347 = vpop.f32.mrf.mxu0
        %v348 = vadd.f32 0.0, %v347
        %v349 = vpop.f32.mrf.mxu0
        %350 = vmatprep.mubr.f32.mxu0 0.0
        %351 = vmatmul.mubr.f32.gmra.mxu0 %v258
        %v352 = vpop.f32.mrf.mxu0
        %v353 = vadd.f32 0.0, %v352
        %v354 = vpop.f32.mrf.mxu0
        %355 = vmatprep.mubr.f32.mxu0 0.0
        %356 = vmatmul.mubr.f32.gmra.mxu0 %v259
        %v357 = vpop.f32.mrf.mxu0
        %v358 = vadd.f32 0.0, %v357
        %v359 = vpop.f32.mrf.mxu0
        %360 = vmatprep.mubr.f32.mxu0 0.0
        %361 = vmatmul.mubr.f32.gmra.mxu0 %v260
        %v362 = vpop.f32.mrf.mxu0
        %v363 = vadd.f32 0.0, %v362
        %v364 = vpop.f32.mrf.mxu0
        %365 = vmatprep.mubr.f32.mxu0 0.0
        %366 = vmatmul.mubr.f32.gmra.mxu0 %v261
        %v367 = vpop.f32.mrf.mxu0
        %v368 = vadd.f32 0.0, %v367
        %v369 = vpop.f32.mrf.mxu0
        %370 = vmatprep.mubr.f32.mxu0 0.0
        %371 = vmatmul.mubr.f32.gmra.mxu0 %v262
        %v372 = vpop.f32.mrf.mxu0
        %v373 = vadd.f32 0.0, %v372
        %v374 = vpop.f32.mrf.mxu0
        %375 = vmatprep.mubr.f32.mxu0 0.0
        %376 = vmatmul.mubr.f32.gmra.mxu0 %v263
        %v377 = vpop.f32.mrf.mxu0
        %v378 = vadd.f32 0.0, %v377
        %v379 = vpop.f32.mrf.mxu0
        %380 = vmatprep.mubr.f32.mxu0 0.0
        %381 = vmatmul.mubr.f32.gmra.mxu0 %v264
        %v382 = vpop.f32.mrf.mxu0
        %v383 = vadd.f32 0.0, %v382
        %v384 = vpop.f32.mrf.mxu0
        %385 = vmatprep.mubr.f32.mxu0 0.0
        %386 = vmatmul.mubr.f32.gmra.mxu0 %v265
        %v387 = vpop.f32.mrf.mxu0
        %v388 = vadd.f32 0.0, %v387
        %v389 = vpop.f32.mrf.mxu0
        %390 = vmatprep.mubr.f32.mxu0 0.0
        %391 = vmatmul.mubr.f32.gmra.mxu0 %v266
        %v392 = vpop.f32.mrf.mxu0
        %v393 = vadd.f32 0.0, %v392
        %v394 = vpop.f32.mrf.mxu0
        %395 = vmatprep.mubr.f32.mxu0 0.0
        %396 = vmatmul.mubr.f32.gmra.mxu0 %v267
        %v397 = vpop.f32.mrf.mxu0
        %v398 = vadd.f32 0.0, %v397
        %v399 = vpop.f32.mrf.mxu0
        %400 = vmatprep.mubr.f32.mxu0 0.0
        %401 = vmatmul.mubr.f32.gmra.mxu0 %v268
        %v402 = vpop.f32.mrf.mxu0
        %v403 = vadd.f32 0.0, %v402
        %v404 = vpop.f32.mrf.mxu0
        %405 = vmatprep.mubr.f32.mxu0 0.0
        %406 = vmatmul.mubr.f32.gmra.mxu0 %v269
        %v407 = vpop.f32.mrf.mxu0
        %v408 = vadd.f32 0.0, %v407
        %v409 = vpop.f32.mrf.mxu0
        %410 = vmatprep.mubr.f32.mxu0 0.0
        %411 = vmatmul.mubr.f32.gmra.mxu0 %v270
        %v412 = vpop.f32.mrf.mxu0
        %v413 = vadd.f32 0.0, %v412
        %v414 = vpop.f32.mrf.mxu0
        %415 = vdwg.mxu0
        %v416 = vld [vmem:[#allocation2] sm:$0xff]
        %v417 = vld [vmem:[#allocation2 + $0x8] sm:$0xff]
        %v418 = vld [vmem:[#allocation2 + $0x10] sm:$0xff]
        %v419 = vld [vmem:[#allocation2 + $0x18] sm:$0xff]
        %v420 = vld [vmem:[#allocation2 + $0x20] sm:$0xff]
        %v421 = vld [vmem:[#allocation2 + $0x28] sm:$0xff]
        %v422 = vld [vmem:[#allocation2 + $0x30] sm:$0xff]
        %v423 = vld [vmem:[#allocation2 + $0x38] sm:$0xff]
        %v424 = vld [vmem:[#allocation2 + $0x40] sm:$0xff]
        %v425 = vld [vmem:[#allocation2 + $0x48] sm:$0xff]
        %v426 = vld [vmem:[#allocation2 + $0x50] sm:$0xff]
        %v427 = vld [vmem:[#allocation2 + $0x58] sm:$0xff]
        %v428 = vld [vmem:[#allocation2 + $0x60] sm:$0xff]
        %v429 = vld [vmem:[#allocation2 + $0x68] sm:$0xff]
        %v430 = vld [vmem:[#allocation2 + $0x70] sm:$0xff]
        %v431 = vld [vmem:[#allocation2 + $0x78] sm:$0xff]
        %432 = vmatprep.subr.mxu0 0.0
        %433 = vmatpush1.msra.mxu0 %v413
        %434 = vmatprep.subr.mxu0 0.0
        %435 = vmatpush1.msra.mxu0 %v408
        %436 = vmatprep.subr.mxu0 0.0
        %437 = vmatpush1.msra.mxu0 %v403
        %438 = vmatprep.subr.mxu0 0.0
        %439 = vmatpush1.msra.mxu0 %v398
        %440 = vmatprep.subr.mxu0 0.0
        %441 = vmatpush1.msra.mxu0 %v393
        %442 = vmatprep.subr.mxu0 0.0
        %443 = vmatpush1.msra.mxu0 %v388
        %444 = vmatprep.subr.mxu0 0.0
        %445 = vmatpush1.msra.mxu0 %v383
        %446 = vmatprep.subr.mxu0 0.0
        %447 = vmatpush1.msra.mxu0 %v378
        %448 = vmatprep.subr.mxu0 0.0
        %449 = vmatpush1.msra.mxu0 %v373
        %450 = vmatprep.subr.mxu0 0.0
        %451 = vmatpush1.msra.mxu0 %v368
        %452 = vmatprep.subr.mxu0 0.0
        %453 = vmatpush1.msra.mxu0 %v363
        %454 = vmatprep.subr.mxu0 0.0
        %455 = vmatpush1.msra.mxu0 %v358
        %456 = vmatprep.subr.mxu0 0.0
        %457 = vmatpush1.msra.mxu0 %v353
        %458 = vmatprep.subr.mxu0 0.0
        %459 = vmatpush1.msra.mxu0 %v348
        %460 = vmatprep.subr.mxu0 0.0
        %461 = vmatpush1.msra.mxu0 %v343
        %462 = vmatprep.subr.mxu0 0.0
        %463 = vmatpush1.msra.mxu0 %v338
        %464 = vmatprep.subr.mxu0 0.0
        %465 = vmatpush2.msra.mxu0 0.0
        %466 = vmatprep.subr.mxu0 0.0
        %467 = vmatpush2.msra.mxu0 0.0
        %468 = vmatprep.subr.mxu0 0.0
        %469 = vmatpush2.msra.mxu0 0.0
        %470 = vmatprep.subr.mxu0 0.0
        %471 = vmatpush2.msra.mxu0 0.0
        %472 = vmatprep.subr.mxu0 0.0
        %473 = vmatpush2.msra.mxu0 0.0
        %474 = vmatprep.subr.mxu0 0.0
        %475 = vmatpush2.msra.mxu0 0.0
        %476 = vmatprep.subr.mxu0 0.0
        %477 = vmatpush2.msra.mxu0 0.0
        %478 = vmatprep.subr.mxu0 0.0
        %479 = vmatpush2.msra.mxu0 0.0
        %480 = vmatprep.subr.mxu0 0.0
        %481 = vmatpush2.msra.mxu0 0.0
        %482 = vmatprep.subr.mxu0 0.0
        %483 = vmatpush2.msra.mxu0 0.0
        %484 = vmatprep.subr.mxu0 0.0
        %485 = vmatpush2.msra.mxu0 0.0
        %486 = vmatprep.subr.mxu0 0.0
        %487 = vmatpush2.msra.mxu0 0.0
        %488 = vmatprep.subr.mxu0 0.0
        %489 = vmatpush2.msra.mxu0 0.0
        %490 = vmatprep.subr.mxu0 0.0
        %491 = vmatpush2.msra.mxu0 0.0
        %492 = vmatprep.subr.mxu0 0.0
        %493 = vmatpush2.msra.mxu0 0.0
        %494 = vmatprep.subr.mxu0 0.0
        %495 = vmatpush2.msra.mxu0 0.0
        %496 = vmatprep.mubr.f32.mxu0 0.0
        %497 = vmatmul.mubr.f32.gmra.mxu0 %v416
        %v498 = vpop.f32.mrf.mxu0
        %v499 = vadd.f32 0.0, %v498
        %v500 = vpop.f32.mrf.mxu0
        %501 = vmatprep.mubr.f32.mxu0 0.0
        %502 = vmatmul.mubr.f32.gmra.mxu0 %v417
        %v503 = vpop.f32.mrf.mxu0
        %v504 = vadd.f32 0.0, %v503
        %v505 = vpop.f32.mrf.mxu0
        %506 = vmatprep.mubr.f32.mxu0 0.0
        %507 = vmatmul.mubr.f32.gmra.mxu0 %v418
        %v508 = vpop.f32.mrf.mxu0
        %v509 = vadd.f32 0.0, %v508
        %v510 = vpop.f32.mrf.mxu0
        %511 = vmatprep.mubr.f32.mxu0 0.0
        %512 = vmatmul.mubr.f32.gmra.mxu0 %v419
        %v513 = vpop.f32.mrf.mxu0
        %v514 = vadd.f32 0.0, %v513
        %v515 = vpop.f32.mrf.mxu0
        %516 = vmatprep.mubr.f32.mxu0 0.0
        %517 = vmatmul.mubr.f32.gmra.mxu0 %v420
        %v518 = vpop.f32.mrf.mxu0
        %v519 = vadd.f32 0.0, %v518
        %v520 = vpop.f32.mrf.mxu0
        %521 = vmatprep.mubr.f32.mxu0 0.0
        %522 = vmatmul.mubr.f32.gmra.mxu0 %v421
        %v523 = vpop.f32.mrf.mxu0
        %v524 = vadd.f32 0.0, %v523
        %v525 = vpop.f32.mrf.mxu0
        %526 = vmatprep.mubr.f32.mxu0 0.0
        %527 = vmatmul.mubr.f32.gmra.mxu0 %v422
        %v528 = vpop.f32.mrf.mxu0
        %v529 = vadd.f32 0.0, %v528
        %v530 = vpop.f32.mrf.mxu0
        %531 = vmatprep.mubr.f32.mxu0 0.0
        %532 = vmatmul.mubr.f32.gmra.mxu0 %v423
        %v533 = vpop.f32.mrf.mxu0
        %v534 = vadd.f32 0.0, %v533
        %v535 = vpop.f32.mrf.mxu0
        %536 = vmatprep.mubr.f32.mxu0 0.0
        %537 = vmatmul.mubr.f32.gmra.mxu0 %v424
        %v538 = vpop.f32.mrf.mxu0
        %v539 = vadd.f32 0.0, %v538
        %v540 = vpop.f32.mrf.mxu0
        %541 = vmatprep.mubr.f32.mxu0 0.0
        %542 = vmatmul.mubr.f32.gmra.mxu0 %v425
        %v543 = vpop.f32.mrf.mxu0
        %v544 = vadd.f32 0.0, %v543
        %v545 = vpop.f32.mrf.mxu0
        %546 = vmatprep.mubr.f32.mxu0 0.0
        %547 = vmatmul.mubr.f32.gmra.mxu0 %v426
        %v548 = vpop.f32.mrf.mxu0
        %v549 = vadd.f32 0.0, %v548
        %v550 = vpop.f32.mrf.mxu0
        %551 = vmatprep.mubr.f32.mxu0 0.0
        %552 = vmatmul.mubr.f32.gmra.mxu0 %v427
        %v553 = vpop.f32.mrf.mxu0
        %v554 = vadd.f32 0.0, %v553
        %v555 = vpop.f32.mrf.mxu0
        %556 = vmatprep.mubr.f32.mxu0 0.0
        %557 = vmatmul.mubr.f32.gmra.mxu0 %v428
        %v558 = vpop.f32.mrf.mxu0
        %v559 = vadd.f32 0.0, %v558
        %v560 = vpop.f32.mrf.mxu0
        %561 = vmatprep.mubr.f32.mxu0 0.0
        %562 = vmatmul.mubr.f32.gmra.mxu0 %v429
        %v563 = vpop.f32.mrf.mxu0
        %v564 = vadd.f32 0.0, %v563
        %v565 = vpop.f32.mrf.mxu0
        %566 = vmatprep.mubr.f32.mxu0 0.0
        %567 = vmatmul.mubr.f32.gmra.mxu0 %v430
        %v568 = vpop.f32.mrf.mxu0
        %v569 = vadd.f32 0.0, %v568
        %v570 = vpop.f32.mrf.mxu0
        %571 = vmatprep.mubr.f32.mxu0 0.0
        %572 = vmatmul.mubr.f32.gmra.mxu0 %v431
        %v573 = vpop.f32.mrf.mxu0
        %v574 = vadd.f32 0.0, %v573
        %v575 = vpop.f32.mrf.mxu0
        %576 = vdwg.mxu0
        %v577 = vadd.f32 %v499, %v504
        %v578 = vadd.f32 %v577, %v509
        %v579 = vadd.f32 %v578, %v514
        %v580 = vadd.f32 %v579, %v519
        %v581 = vadd.f32 %v580, %v524
        %v582 = vadd.f32 %v581, %v529
        %v583 = vadd.f32 %v582, %v534
        %v584 = vadd.f32 %v583, %v539
        %v585 = vadd.f32 %v584, %v544
        %v586 = vadd.f32 %v585, %v549
        %v587 = vadd.f32 %v586, %v554
        %v588 = vadd.f32 %v587, %v559
        %v589 = vadd.f32 %v588, %v564
        %v590 = vadd.f32 %v589, %v569
        %v591 = vadd.f32 %v590, %v574
        %v592 = vrot.slane %v591, 4
        %v593 = vadd.f32 %v591, %v592
        %v594 = vrot.slane %v593, 2
        %v595 = vadd.f32 %v593, %v594
        %v596 = vrot.slane %v595, 1
        %v597 = vadd.f32 %v595, %v596
        %v598 = vmul.f32 %v597, 0.015625
        %v599 = vmul.f32 %v499, %v499
        %v600 = vmul.f32 %v504, %v504
        %v601 = vmul.f32 %v509, %v509
        %v602 = vmul.f32 %v514, %v514
        %v603 = vmul.f32 %v519, %v519
        %v604 = vmul.f32 %v524, %v524
        %v605 = vmul.f32 %v529, %v529
        %v606 = vmul.f32 %v534, %v534
        %v607 = vmul.f32 %v539, %v539
        %v608 = vmul.f32 %v544, %v544
        %v609 = vmul.f32 %v549, %v549
        %v610 = vmul.f32 %v554, %v554
        %v611 = vmul.f32 %v559, %v559
        %v612 = vmul.f32 %v564, %v564
        %v613 = vmul.f32 %v569, %v569
        %v614 = vmul.f32 %v574, %v574
        %v615 = vadd.f32 %v599, %v600
        %v616 = vadd.f32 %v615, %v601
        %v617 = vadd.f32 %v616, %v602
        %v618 = vadd.f32 %v617, %v603
        %v619 = vadd.f32 %v618, %v604
        %v620 = vadd.f32 %v619, %v605
        %v621 = vadd.f32 %v620, %v606
        %v622 = vadd.f32 %v621, %v607
        %v623 = vadd.f32 %v622, %v608
        %v624 = vadd.f32 %v623, %v609
        %v625 = vadd.f32 %v624, %v610
        %v626 = vadd.f32 %v625, %v611
        %v627 = vadd.f32 %v626, %v612
        %v628 = vadd.f32 %v627, %v613
        %v629 = vadd.f32 %v628, %v614
        %v630 = vrot.slane %v629, 4
        %v631 = vadd.f32 %v629, %v630
        %v632 = vrot.slane %v631, 2
        %v633 = vadd.f32 %v631, %v632
        %v634 = vrot.slane %v633, 1
        %v635 = vadd.f32 %v633, %v634
        %v636 = vmul.f32 %v635, 0.015625
        %v637 = vmul.f32 %v598, %v598
        %v638 = vsub.f32 %v636, %v637
        %v639 = vmax.f32 %v638, 0.0
        %v640 = vadd.f32 %v639, 1e-05
        %v641 = vrsqrt.pop %v640
        %v642 = vld [vmem:[%s203] sm:$0x1]
        %v643 = vmul.f32 %v641, %v642
        %v644 = vld [vmem:[%s206] sm:$0x1]
        %v645 = vmul.f32 %v598, %v643
        %v646 = vsub.f32 %v644, %v645
        %v647 = vlaneseq
        %v648 = vshrl.u32 %v647, 7
        %v649 = vsub.s32 0, %v648
        %v650 = vrot.slane %v643, %v649
        %v651 = vmul.f32 %v499, %v650
        %v652 = vmul.f32 %v504, %v650
        %v653 = vmul.f32 %v509, %v650
        %v654 = vmul.f32 %v514, %v650
        %v655 = vmul.f32 %v519, %v650
        %v656 = vmul.f32 %v524, %v650
        %v657 = vmul.f32 %v529, %v650
        %v658 = vmul.f32 %v534, %v650
        %v659 = vmul.f32 %v539, %v650
        %v660 = vmul.f32 %v544, %v650
        %v661 = vmul.f32 %v549, %v650
        %v662 = vmul.f32 %v554, %v650
        %v663 = vmul.f32 %v559, %v650
        %v664 = vmul.f32 %v564, %v650
        %v665 = vmul.f32 %v569, %v650
        %v666 = vmul.f32 %v574, %v650
        %v668 = vlaneseq
        %v669 = vshrl.u32 %v668, 7
        %v670 = vsub.s32 0, %v669
        %v671 = vrot.slane %v646, %v670
        %v673 = vadd.f32 %v651, %v671
        %v674 = vadd.f32 %v652, %v671
        %v675 = vadd.f32 %v653, %v671
        %v676 = vadd.f32 %v654, %v671
        %v677 = vadd.f32 %v655, %v671
        %v678 = vadd.f32 %v656, %v671
        %v679 = vadd.f32 %v657, %v671
        %v680 = vadd.f32 %v658, %v671
        %v681 = vadd.f32 %v659, %v671
        %v682 = vadd.f32 %v660, %v671
        %v683 = vadd.f32 %v661, %v671
        %v684 = vadd.f32 %v662, %v671
        %v685 = vadd.f32 %v663, %v671
        %v686 = vadd.f32 %v664, %v671
        %v687 = vadd.f32 %v665, %v671
        %v688 = vadd.f32 %v666, %v671
        %v689 = vmax.f32 %v673, 0.0
        %v690 = vmax.f32 %v674, 0.0
        %v691 = vmax.f32 %v675, 0.0
        %v692 = vmax.f32 %v676, 0.0
        %v693 = vmax.f32 %v677, 0.0
        %v694 = vmax.f32 %v678, 0.0
        %v695 = vmax.f32 %v679, 0.0
        %v696 = vmax.f32 %v680, 0.0
        %v697 = vmax.f32 %v681, 0.0
        %v698 = vmax.f32 %v682, 0.0
        %v699 = vmax.f32 %v683, 0.0
        %v700 = vmax.f32 %v684, 0.0
        %v701 = vmax.f32 %v685, 0.0
        %v702 = vmax.f32 %v686, 0.0
        %v703 = vmax.f32 %v687, 0.0
        %v704 = vmax.f32 %v688, 0.0
        %705 = vst [vmem:[#allocation7] sm:$0xff] %v689
        %706 = vst [vmem:[#allocation7 + $0x8] sm:$0xff] %v690
        %707 = vst [vmem:[#allocation7 + $0x10] sm:$0xff] %v691
        %708 = vst [vmem:[#allocation7 + $0x18] sm:$0xff] %v692
        %709 = vst [vmem:[#allocation7 + $0x20] sm:$0xff] %v693
        %710 = vst [vmem:[#allocation7 + $0x28] sm:$0xff] %v694
        %711 = vst [vmem:[#allocation7 + $0x30] sm:$0xff] %v695
        %712 = vst [vmem:[#allocation7 + $0x38] sm:$0xff] %v696
        %713 = vst [vmem:[#allocation7 + $0x40] sm:$0xff] %v697
        %714 = vst [vmem:[#allocation7 + $0x48] sm:$0xff] %v698
        %715 = vst [vmem:[#allocation7 + $0x50] sm:$0xff] %v699
        %716 = vst [vmem:[#allocation7 + $0x58] sm:$0xff] %v700
        %717 = vst [vmem:[#allocation7 + $0x60] sm:$0xff] %v701
        %718 = vst [vmem:[#allocation7 + $0x68] sm:$0xff] %v702
        %719 = vst [vmem:[#allocation7 + $0x70] sm:$0xff] %v703
        %720 = vst [vmem:[#allocation7 + $0x78] sm:$0xff] %v704
        // Predicated region
        $region49: #{tpu_custom_call.1} parent=31 // pred_check
          %p721 = pneg %p111
        $region50: #{tpu_custom_call.1} parent=31 // pred_check_branch
          %723 = sbr.rel (%p721) target = $region52
        $region51: #{tpu_custom_call.1} parent=31 // pred_region
          %s725 = ssub.s32 2048, 2048
          %726 = vsyncadd [#allocation6], %s725
          %s727 = sshll.u32 [#allocation7], 4
          %s728 = int_to_ptr.vmem [resolvable:$true] %s727
          %733 = dma.vmem_to_hbm [thread:$0]  %s728, 2048, %s5, [#allocation6], 128, 128, 8
        $region52: #{tpu_custom_call.1} parent=31 // pred_fallthru
          _
        // Predicated region
        $region53: #{tpu_custom_call.1} parent=31 // pred_check
          %p734 = pneg %p111
        $region54: #{tpu_custom_call.1} parent=31 // pred_check_branch
          %736 = sbr.rel (%p734) target = $region56
        $region55: #{tpu_custom_call.1} parent=31 // pred_region
          %737 = dma.done [#allocation6], 2048
        $region56: #{tpu_custom_call.1} parent=31 // pred_fallthru
          _
      $region32: #{tpu_custom_call.1} parent=5 // pred_fallthru
        _
      %p738 = scmp.le.s32.totalorder 2, %s15
      // Predicated region
      $region57: #{tpu_custom_call.1} parent=5 // pred_check
        %p739 = pneg %p738
      $region58: #{tpu_custom_call.1} parent=5 // pred_check_branch
        %741 = sbr.rel (%p739) target = $region60
      $region59: #{tpu_custom_call.1} parent=5 // pred_region
        %s742 = ssub.s32 %s15, 2
      $region60: #{tpu_custom_call.1} parent=5 // pred_fallthru
        _
    $region6: #{tpu_custom_call.1} parent=1 // loop_footer
      %s19 = sadd.s32 1, %s15
    $region7: #{tpu_custom_call.1} parent=1 // loop_footer_branch
      %14 = sbr.rel target = $region3
    $region8: #{tpu_custom_call.1} parent=1 // loop_exit
      _
    %743 = vsyncpa [#allocation5], 1
    %s744 = scalar_lea.sflag [#allocation5], 1
    %745 = vsyncpa %s744, 1
    %746 = vsyncpa [#allocation6], 1
    %s747 = scalar_lea.sflag [#allocation6], 1
    %748 = vsyncpa %s747, 1
  %749 = vsyncmov [#allocation3]
  %s750 = vpop.sfrf %749
  %p751 = scmp.eq.s32.totalorder %s750, 0
  %p752 = pneg %p751
  %754 = shalt.err (%p752)
  %s755 = scalar_lea.sflag [#allocation3], 1
  %756 = vsyncmov %s755
  %s757 = vpop.sfrf %756
  %p758 = scmp.eq.s32.totalorder %s757, 0
  %p759 = pneg %p758
  %761 = shalt.err (%p759)

</llo_original>
